<compile_context>
chip_gen: v7x
topology: tpu7x:2x2x1
jax: 0.10.0
libtpu: 0.0.40
codegen_flags: <defaults>
</compile_context>

<pallas_src>
import functools

import jax
import jax.numpy as jnp
from jax.experimental import pallas as pl
from jax.experimental.pallas import tpu as pltpu


def _round_up(n, m):
    return ((n + m - 1) // m) * m


def _pad2(a, rows, cols):
    r, c = a.shape
    return jnp.pad(a, ((0, rows - r), (0, cols - c)))


def _detect_tpu():
    """Best-effort (tensorcores_per_device, physical_vmem_bytes_per_core)."""
    vmem_bytes = 128 << 20
    num_tc = 1
    kind = ""
    try:
        kind = jax.devices()[0].device_kind.lower()
    except Exception:
        pass
    try:
        info = pltpu.get_tpu_info()
        vmem_bytes = int(getattr(info, "vmem_capacity_bytes", vmem_bytes))
        for attr in ("num_cores", "tensorcore_count", "num_tensorcores"):
            v = getattr(info, attr, None)
            if isinstance(v, int) and v > 0:
                num_tc = v
                break
    except Exception:
        pass
    # Fallback heuristic: parts with 2 TensorCores behind one device
    # (megacore v4/v5p, dual-TC v7x) benefit from grid >= 2 + "parallel".
    if num_tc == 1 and any(t in kind for t in ("v7", "v4", "v5p")):
        num_tc = 2
    # v7x has 64 MiB VMEM per TensorCore.
    if "v7" in kind:
        vmem_bytes = min(vmem_bytes, 64 << 20)
    return num_tc, vmem_bytes


def _mlp_kernel(num_layers, compute_dtype, x_ref, *refs):
    """Fused MLP kernel.

    refs layout: [w0, b0, w1, b1, ..., w_last, b_last, out_ref]
    Hidden layers apply ReLU; the final layer is linear (Q-values).
    Matmuls hit the MXU in `compute_dtype` (bf16) with f32 accumulation;
    bias add / ReLU happen on the f32 accumulator, then h is carried in
    compute_dtype between layers (half the vreg/VMEM bytes per activation).
    """
    out_ref = refs[-1]
    param_refs = refs[:-1]

    h = x_ref[...]                      # already compute_dtype
    for layer in range(num_layers + 1):
        w_ref = param_refs[2 * layer]
        b_ref = param_refs[2 * layer + 1]
        acc = jnp.dot(h, w_ref[...], preferred_element_type=jnp.float32)
        acc = acc + b_ref[...]          # bias is f32
        if layer < num_layers:          # ReLU only on hidden layers
            h = jnp.maximum(acc, 0.0).astype(compute_dtype)
        else:
            out_ref[...] = acc.astype(out_ref.dtype)


def qnetwork_forward(x, params, *, batch_tile=None,
                     param_dtype=jnp.bfloat16, feature_pad=128):
    """Run the fused QNetwork MLP as a single Pallas TPU kernel.

    x:      (B, state_size) float32
    params: list of (W, b) pairs; W is (in_dim, out_dim), b is (1, out_dim)
            or (out_dim,). The last pair is the output head (no ReLU).
    Returns (B, action_size) float32 Q-values.
    """
    B, state_size = x.shape
    num_layers = len(params) - 1
    action_size = params[-1][0].shape[1]
    assert params[0][0].shape[0] == state_size

    num_tc, vmem_physical = _detect_tpu()

    # --- lane-dense (multiple-of-128) feature dims; zero padding is exact ---
    dims = [state_size] + [w.shape[1] for (w, _) in params]
    pdims = [_round_up(d, feature_pad) for d in dims]
    state_pad, action_pad = pdims[0], pdims[-1]

    # --- batch tiling policy (chip-aware) ---
    # Multi-TC parts: split the batch so grid >= num_tc and "parallel" shards
    # it across TensorCores (params are tiny, duplicating them is free).
    # Single-TC parts: one big tile (grid steps are a serial loop -> overhead).
    if batch_tile is None:
        if num_tc > 1:
            per_core = pl.cdiv(max(B, 1), num_tc)
            batch_tile = min(512, _round_up(per_core, 8))
        else:
            batch_tile = min(1024, _round_up(B, 8))
    batch_tile = max(8, _round_up(batch_tile, 8))
    Bp = _round_up(B, batch_tile)
    grid = (Bp // batch_tile,)

    compute_itemsize = jnp.dtype(param_dtype).itemsize

    # Pre-cast activations to the MXU compute dtype at the boundary: halves
    # activation HBM->VMEM DMA bytes; accumulation stays f32 in-kernel.
    x_p = jnp.pad(x, ((0, Bp - B), (0, state_pad - state_size))).astype(param_dtype)

    # --- pad + narrow-cast params; whole-array resident in VMEM ---
    flat_params = []
    param_specs = []
    param_bytes = 0
    for li, (w, b) in enumerate(params):
        wp = _pad2(w, pdims[li], pdims[li + 1]).astype(param_dtype)
        bp = _pad2(jnp.reshape(b, (1, -1)), 1, pdims[li + 1]).astype(jnp.float32)
        flat_params += [wp, bp]
        param_specs += [pl.BlockSpec(memory_space=pltpu.MemorySpace.VMEM),
                        pl.BlockSpec(memory_space=pltpu.MemorySpace.VMEM)]
        param_bytes += wp.size * compute_itemsize + bp.size * 4

    # --- advisory cost + chip-aware VMEM budget ---
    flops = 2 * Bp * sum(pdims[i] * pdims[i + 1] for i in range(len(pdims) - 1))
    bytes_accessed = (Bp * state_pad * compute_itemsize
                      + param_bytes + Bp * action_pad * 4)
    hidden_pad = max(pdims[1:-1]) if num_layers > 0 else state_pad
    vmem_needed = (2 * batch_tile * state_pad * compute_itemsize  # x tiles (2x)
                   + 2 * batch_tile * action_pad * 4              # out tiles (2x)
                   + param_bytes                                  # resident params
                   + 4 * batch_tile * hidden_pad * 4)             # activation temps
    vmem_cap = max(32 << 20, (vmem_physical * 4) // 5)            # ~20% headroom
    vmem_limit = int(min(max(2 * vmem_needed + (8 << 20), 16 << 20), vmem_cap))

    # TODO(synk): for very wide nets (param_bytes > ~half the VMEM budget,
    # e.g. hidden >= 2048-4096 with several layers on v7x) switch to
    # BlockSpec-tiled weights with an "arbitrary" reduction grid axis instead
    # of full residency.
    if param_bytes > vmem_cap // 2:
        raise ValueError(
            f"params ({param_bytes} B) exceed half the VMEM budget "
            f"({vmem_cap} B); tiled-weight fallback not implemented")

    kernel = functools.partial(_mlp_kernel, num_layers, param_dtype)

    out_p = pl.pallas_call(
        kernel,
        out_shape=jax.ShapeDtypeStruct((Bp, action_pad), jnp.float32),
        grid_spec=pltpu.PrefetchScalarGridSpec(
            num_scalar_prefetch=0,
            grid=grid,
            in_specs=[pl.BlockSpec((batch_tile, state_pad), lambda i: (i, 0))]
            + param_specs,
            out_specs=pl.BlockSpec((batch_tile, action_pad), lambda i: (i, 0)),
        ),
        compiler_params=pltpu.CompilerParams(
            dimension_semantics=("parallel",),
            vmem_limit_bytes=vmem_limit,
        ),
        cost_estimate=pl.CostEstimate(
            flops=flops, transcendentals=0, bytes_accessed=bytes_accessed),
    )(x_p, *flat_params)

    return out_p[:B, :action_size]


def init_qnetwork_params(key, state_size, action_size, num_layers, num_neurons):
    """Deterministic init mirroring nn.Linear shapes (uniform +-1/sqrt(fan_in))."""
    params = []
    dims = [state_size] + [num_neurons] * num_layers + [action_size]
    for i in range(len(dims) - 1):
        in_dim, out_dim = dims[i], dims[i + 1]
        key, kw, kb = jax.random.split(key, 3)
        bound = 1.0 / jnp.sqrt(jnp.float32(in_dim))
        w = jax.random.uniform(kw, (in_dim, out_dim), jnp.float32, -bound, bound)
        b = jax.random.uniform(kb, (1, out_dim), jnp.float32, -bound, bound)
        params.append((w, b))
    return params


def qnetwork_reference(x, params, compute_dtype=jnp.float32):
    """Plain-JAX reference. compute_dtype=bf16 matches the kernel's MXU path."""
    h = x.astype(jnp.float32)
    for (w, b) in params[:-1]:
        y = jnp.dot(h.astype(compute_dtype), w.astype(compute_dtype),
                    preferred_element_type=jnp.float32) + b
        h = jnp.maximum(y, 0.0)
    w, b = params[-1]
    return jnp.dot(h.astype(compute_dtype), w.astype(compute_dtype),
                   preferred_element_type=jnp.float32) + b


if __name__ == "__main__":
    # Small shapes consistent with the module: a flattened RecSim state vector
    # fed through num_layers hidden layers to action_size Q-values.
    # TODO(synk): SlateRecSimEnv / flatten_state are numpy preprocessing outside
    # the network; they are replaced by a synthetic state batch here.
    batch = 64
    state_size = 32      # flatten_state(...) length (synthetic)
    action_size = 16     # env.num_candidates (synthetic)
    num_layers = 2
    num_neurons = 32

    key = jax.random.PRNGKey(0)
    key, kx = jax.random.split(key)
    x = jax.random.normal(kx, (batch, state_size), jnp.float32)

    params = init_qnetwork_params(key, state_size, action_size,
                                  num_layers, num_neurons)

    # No batch_tile override: the wrapper picks one tile on single-TC chips
    # (v5e/v6e) and splits the batch across TensorCores on dual-TC parts (v7x).
    q = qnetwork_forward(x, params)
    q = jax.block_until_ready(q)
    assert q.shape == (batch, action_size)

    # Tight check against a reference using the same bf16 matmul path.
    q_ref_bf16 = qnetwork_reference(x, params, compute_dtype=jnp.bfloat16)
    assert jnp.allclose(q, q_ref_bf16, atol=2e-3, rtol=2e-3)

    # Loose check against the exact f32 reference (bf16 weight quantization).
    q_ref_f32 = qnetwork_reference(x, params, compute_dtype=jnp.float32)
    assert jnp.allclose(q, q_ref_f32, atol=5e-2, rtol=5e-2)

    print("KERNEL_OK")
</pallas_src>

<mosaic_0001>
module attributes {stable_mosaic.version = 11 : i64} {
  func.func @_mlp_kernel(%arg0: i32, %arg1: memref<64x128xbf16, #tpu.memory_space<vmem>>, %arg2: memref<128x128xbf16, #tpu.memory_space<vmem>>, %arg3: memref<1x128xf32, #tpu.memory_space<vmem>>, %arg4: memref<128x128xbf16, #tpu.memory_space<vmem>>, %arg5: memref<1x128xf32, #tpu.memory_space<vmem>>, %arg6: memref<128x128xbf16, #tpu.memory_space<vmem>>, %arg7: memref<1x128xf32, #tpu.memory_space<vmem>>, %arg8: memref<64x128xf32, #tpu.memory_space<vmem>>) attributes {dimension_semantics = [#tpu.dimension_semantics<parallel>], iteration_bounds = array<i64: 1>, scalar_prefetch = 0 : i64, scratch_operands = 0 : i64, tpu.core_type = #tpu.core_type<tc>, window_params = [{transform_indices = @transform_0, window_bounds = array<i64: 64, 128>}, {pipeline_mode = #tpu.pipeline_mode<synchronous>, transform_indices = @transform_1, window_bounds = array<i64: 128, 128>}, {pipeline_mode = #tpu.pipeline_mode<synchronous>, transform_indices = @transform_2, window_bounds = array<i64: 1, 128>}, {pipeline_mode = #tpu.pipeline_mode<synchronous>, transform_indices = @transform_3, window_bounds = array<i64: 128, 128>}, {pipeline_mode = #tpu.pipeline_mode<synchronous>, transform_indices = @transform_4, window_bounds = array<i64: 1, 128>}, {pipeline_mode = #tpu.pipeline_mode<synchronous>, transform_indices = @transform_5, window_bounds = array<i64: 128, 128>}, {pipeline_mode = #tpu.pipeline_mode<synchronous>, transform_indices = @transform_6, window_bounds = array<i64: 1, 128>}, {transform_indices = @transform_7, window_bounds = array<i64: 64, 128>}]} {
    %c0 = arith.constant 0 : index
    %c0_0 = arith.constant 0 : index
    %0 = vector.load %arg1[%c0, %c0_0] : memref<64x128xbf16, #tpu.memory_space<vmem>>, vector<64x128xbf16>
    %c0_1 = arith.constant 0 : index
    %c0_2 = arith.constant 0 : index
    %1 = vector.load %arg2[%c0_1, %c0_2] : memref<128x128xbf16, #tpu.memory_space<vmem>>, vector<128x128xbf16>
    %cst = arith.constant dense<0.000000e+00> : vector<64x128xf32>
    %2 = tpu.matmul %0, %1, %cst {dimension_numbers = #tpu.dot_dimension_numbers<[1], [0], [0], [1], [0, 0, 1, 1], [], []>} : vector<64x128xbf16>, vector<128x128xbf16>, vector<64x128xf32> -> vector<64x128xf32>
    %c0_3 = arith.constant 0 : index
    %c0_4 = arith.constant 0 : index
    %3 = vector.load %arg3[%c0_3, %c0_4] : memref<1x128xf32, #tpu.memory_space<vmem>>, vector<1x128xf32>
    %4 = vector.broadcast %3 : vector<1x128xf32> to vector<64x128xf32>
    %5 = arith.addf %2, %4 : vector<64x128xf32>
    %cst_5 = arith.constant 0.000000e+00 : f32
    %6 = vector.broadcast %cst_5 : f32 to vector<64x128xf32>
    %7 = arith.maximumf %5, %6 : vector<64x128xf32>
    %8 = arith.truncf %7 : vector<64x128xf32> to vector<64x128xbf16>
    %c0_6 = arith.constant 0 : index
    %c0_7 = arith.constant 0 : index
    %9 = vector.load %arg4[%c0_6, %c0_7] : memref<128x128xbf16, #tpu.memory_space<vmem>>, vector<128x128xbf16>
    %cst_8 = arith.constant dense<0.000000e+00> : vector<64x128xf32>
    %10 = tpu.matmul %8, %9, %cst_8 {dimension_numbers = #tpu.dot_dimension_numbers<[1], [0], [0], [1], [0, 0, 1, 1], [], []>} : vector<64x128xbf16>, vector<128x128xbf16>, vector<64x128xf32> -> vector<64x128xf32>
    %c0_9 = arith.constant 0 : index
    %c0_10 = arith.constant 0 : index
    %11 = vector.load %arg5[%c0_9, %c0_10] : memref<1x128xf32, #tpu.memory_space<vmem>>, vector<1x128xf32>
    %12 = vector.broadcast %11 : vector<1x128xf32> to vector<64x128xf32>
    %13 = arith.addf %10, %12 : vector<64x128xf32>
    %cst_11 = arith.constant 0.000000e+00 : f32
    %14 = vector.broadcast %cst_11 : f32 to vector<64x128xf32>
    %15 = arith.maximumf %13, %14 : vector<64x128xf32>
    %16 = arith.truncf %15 : vector<64x128xf32> to vector<64x128xbf16>
    %c0_12 = arith.constant 0 : index
    %c0_13 = arith.constant 0 : index
    %17 = vector.load %arg6[%c0_12, %c0_13] : memref<128x128xbf16, #tpu.memory_space<vmem>>, vector<128x128xbf16>
    %cst_14 = arith.constant dense<0.000000e+00> : vector<64x128xf32>
    %18 = tpu.matmul %16, %17, %cst_14 {dimension_numbers = #tpu.dot_dimension_numbers<[1], [0], [0], [1], [0, 0, 1, 1], [], []>} : vector<64x128xbf16>, vector<128x128xbf16>, vector<64x128xf32> -> vector<64x128xf32>
    %c0_15 = arith.constant 0 : index
    %c0_16 = arith.constant 0 : index
    %19 = vector.load %arg7[%c0_15, %c0_16] : memref<1x128xf32, #tpu.memory_space<vmem>>, vector<1x128xf32>
    %20 = vector.broadcast %19 : vector<1x128xf32> to vector<64x128xf32>
    %21 = arith.addf %18, %20 : vector<64x128xf32>
    %c0_17 = arith.constant 0 : index
    %c0_18 = arith.constant 0 : index
    %22 = vector.load %arg8[%c0_17, %c0_18] : memref<64x128xf32, #tpu.memory_space<vmem>>, vector<64x128xf32>
    tpu.vector_store %arg8[%c0_17, %c0_18], %21 {strides = array<i32>} : memref<64x128xf32, #tpu.memory_space<vmem>>, vector<64x128xf32>,
    return
  }
  func.func @transform_0(%arg0: i32) -> (i32, i32) {
    %c0_i32 = arith.constant 0 : i32
    %c0_i32_0 = arith.constant 0 : i32
    return %arg0, %c0_i32 : i32, i32
  }
  func.func @transform_1(%arg0: i32) -> (i32, i32) {
    %c0_i32 = arith.constant 0 : i32
    %c0_i32_0 = arith.constant 0 : i32
    %c0_i32_1 = arith.constant 0 : i32
    return %c0_i32, %c0_i32_0 : i32, i32
  }
  func.func @transform_2(%arg0: i32) -> (i32, i32) {
    %c0_i32 = arith.constant 0 : i32
    %c0_i32_0 = arith.constant 0 : i32
    %c0_i32_1 = arith.constant 0 : i32
    return %c0_i32, %c0_i32_0 : i32, i32
  }
  func.func @transform_3(%arg0: i32) -> (i32, i32) {
    %c0_i32 = arith.constant 0 : i32
    %c0_i32_0 = arith.constant 0 : i32
    %c0_i32_1 = arith.constant 0 : i32
    return %c0_i32, %c0_i32_0 : i32, i32
  }
  func.func @transform_4(%arg0: i32) -> (i32, i32) {
    %c0_i32 = arith.constant 0 : i32
    %c0_i32_0 = arith.constant 0 : i32
    %c0_i32_1 = arith.constant 0 : i32
    return %c0_i32, %c0_i32_0 : i32, i32
  }
  func.func @transform_5(%arg0: i32) -> (i32, i32) {
    %c0_i32 = arith.constant 0 : i32
    %c0_i32_0 = arith.constant 0 : i32
    %c0_i32_1 = arith.constant 0 : i32
    return %c0_i32, %c0_i32_0 : i32, i32
  }
  func.func @transform_6(%arg0: i32) -> (i32, i32) {
    %c0_i32 = arith.constant 0 : i32
    %c0_i32_0 = arith.constant 0 : i32
    %c0_i32_1 = arith.constant 0 : i32
    return %c0_i32, %c0_i32_0 : i32, i32
  }
  func.func @transform_7(%arg0: i32) -> (i32, i32) {
    %c0_i32 = arith.constant 0 : i32
    %c0_i32_0 = arith.constant 0 : i32
    return %arg0, %c0_i32 : i32, i32
  }
}

</mosaic_0001>

<llo_original>
// kernel: tpu_custom_call.1
$region0: #{tpu_custom_call.1}
  #allocation0 [shape = 'u32[]', space=smem, size = 0x4, offset = 0x4, fixed_abs, tag = 'smem constant byte address 0x4 - core index']
  #allocation1 [shape = 'u32[144,128]{1,0:T(1,128)}', space=vmem, size = 0x12000, scoped, tag = 'internal scratch']
  %s0 = inlined_call_operand.hbm [shape: bf16[64,128], index: 0, kind: input, shape index: {}]
  %s1 = inlined_call_operand.hbm [shape: bf16[128,128], index: 1, kind: input, shape index: {}]
  %s2 = inlined_call_operand.vmem [shape: f32[1,128], index: 2, kind: input, shape index: {}]
  %s3 = inlined_call_operand.hbm [shape: bf16[128,128], index: 3, kind: input, shape index: {}]
  %s4 = inlined_call_operand.vmem [shape: f32[1,128], index: 4, kind: input, shape index: {}]
  %s5 = inlined_call_operand.hbm [shape: bf16[128,128], index: 5, kind: input, shape index: {}]
  %s6 = inlined_call_operand.vmem [shape: f32[1,128], index: 6, kind: input, shape index: {}]
  %s7 = inlined_call_operand.hbm [shape: f32[64,128], index: 7, kind: output, shape index: {}]
  %s8 = sld [smem:[#allocation0]]
  $region54: #{tpu_custom_call.1} parent=0
    _
  %s10 = ssub.s32 1, %s8
  %s11 = scalar_select 0, %s10, %s8
  $region1: #{tpu_custom_call.1} parent=0
    #allocation2 [shape = 'u8[16384]{0}', space=vmem, size = 0x4000, scoped, tag = 'input window, operand 0, single buffered']
    #allocation3 [shape = 's32[1]{0}', space=sflag, size = 0x4, scoped, tag = 'scoped memory for tpu_custom_call.1']
    #allocation4 [shape = 's32[1]{0}', space=sflag, size = 0x4, scoped, tag = 'scoped memory for tpu_custom_call.1']
    #allocation5 [shape = 'u8[32768]{0}', space=vmem, size = 0x8000, scoped, tag = 'input window, operand 1, single buffered']
    #allocation6 [shape = 's32[1]{0}', space=sflag, size = 0x4, scoped, tag = 'scoped memory for tpu_custom_call.1']
    #allocation7 [shape = 'u8[32768]{0}', space=vmem, size = 0x8000, scoped, tag = 'input window, operand 3, single buffered']
    #allocation8 [shape = 'u8[32768]{0}', space=vmem, size = 0x8000, scoped, tag = 'input window, operand 5, single buffered']
    #allocation9 [shape = 's32[1]{0}', space=sflag, size = 0x4, scoped, tag = 'scoped memory for tpu_custom_call.1']
    #allocation10 [shape = 'u8[32768]{0}', space=vmem, size = 0x8000, scoped, tag = 'output window, operand 0, single buffered']
    %12 = vsyncpa [#allocation3], 0
    %13 = vsyncpa [#allocation6], 0
    %14 = vsyncpa [#allocation9], 0
    %15 = vsyncpa [#allocation4], 0
    // Predicated region
    $region2: #{tpu_custom_call.1} parent=1 // pred_check
      _
    $region3: #{tpu_custom_call.1} parent=1 // pred_check_branch
      %17 = sbr.rel (0) target = $region5
    $region4: #{tpu_custom_call.1} parent=1 // pred_region
      %s19 = ssub.s32 512, 512
      %20 = vsyncadd [#allocation3], %s19
      %s21 = sshll.u32 [#allocation2], 4
      %s22 = int_to_ptr.vmem [resolvable:$true] %s21
      %27 = dma.hbm_to_vmem [thread:$0]  %s0, 512, %s22, [#allocation3], 64, 64, 4
    $region5: #{tpu_custom_call.1} parent=1 // pred_fallthru
      _
    // Predicated region
    $region6: #{tpu_custom_call.1} parent=1 // pred_check
      _
    $region7: #{tpu_custom_call.1} parent=1 // pred_check_branch
      %29 = sbr.rel (0) target = $region9
    $region8: #{tpu_custom_call.1} parent=1 // pred_region
      %s31 = ssub.s32 1024, 1024
      %32 = vsyncadd [#allocation6], %s31
      %s33 = sshll.u32 [#allocation5], 4
      %s34 = int_to_ptr.vmem [resolvable:$true] %s33
      %39 = dma.hbm_to_vmem [thread:$0]  %s1, 1024, %s34, [#allocation6], 64, 64, 4
    $region9: #{tpu_custom_call.1} parent=1 // pred_fallthru
      _
    // Predicated region
    $region10: #{tpu_custom_call.1} parent=1 // pred_check
      _
    $region11: #{tpu_custom_call.1} parent=1 // pred_check_branch
      %41 = sbr.rel (0) target = $region13
    $region12: #{tpu_custom_call.1} parent=1 // pred_region
      _
    $region13: #{tpu_custom_call.1} parent=1 // pred_fallthru
      _
    // Predicated region
    $region14: #{tpu_custom_call.1} parent=1 // pred_check
      _
    $region15: #{tpu_custom_call.1} parent=1 // pred_check_branch
      %43 = sbr.rel (0) target = $region17
    $region16: #{tpu_custom_call.1} parent=1 // pred_region
      %s45 = ssub.s32 1024, 1024
      %46 = vsyncadd [#allocation6], %s45
      %s47 = sshll.u32 [#allocation7], 4
      %s48 = int_to_ptr.vmem [resolvable:$true] %s47
      %53 = dma.hbm_to_vmem [thread:$0]  %s3, 1024, %s48, [#allocation6], 64, 64, 4
    $region17: #{tpu_custom_call.1} parent=1 // pred_fallthru
      _
    // Predicated region
    $region18: #{tpu_custom_call.1} parent=1 // pred_check
      _
    $region19: #{tpu_custom_call.1} parent=1 // pred_check_branch
      %55 = sbr.rel (0) target = $region21
    $region20: #{tpu_custom_call.1} parent=1 // pred_region
      _
    $region21: #{tpu_custom_call.1} parent=1 // pred_fallthru
      _
    // Predicated region
    $region22: #{tpu_custom_call.1} parent=1 // pred_check
      _
    $region23: #{tpu_custom_call.1} parent=1 // pred_check_branch
      %57 = sbr.rel (0) target = $region25
    $region24: #{tpu_custom_call.1} parent=1 // pred_region
      %s59 = ssub.s32 1024, 1024
      %60 = vsyncadd [#allocation9], %s59
      %s61 = sshll.u32 [#allocation8], 4
      %s62 = int_to_ptr.vmem [resolvable:$true] %s61
      %67 = dma.hbm_to_vmem [thread:$0]  %s5, 1024, %s62, [#allocation9], 64, 64, 4
    $region25: #{tpu_custom_call.1} parent=1 // pred_fallthru
      _
    // Predicated region
    $region26: #{tpu_custom_call.1} parent=1 // pred_check
      _
    $region27: #{tpu_custom_call.1} parent=1 // pred_check_branch
      %69 = sbr.rel (0) target = $region29
    $region28: #{tpu_custom_call.1} parent=1 // pred_region
      _
    $region29: #{tpu_custom_call.1} parent=1 // pred_fallthru
      _
    // Predicated region
    $region30: #{tpu_custom_call.1} parent=1 // pred_check
      _
    $region31: #{tpu_custom_call.1} parent=1 // pred_check_branch
      %71 = sbr.rel (0) target = $region33
    $region32: #{tpu_custom_call.1} parent=1 // pred_region
      %72 = dma.done [#allocation3], 512
    $region33: #{tpu_custom_call.1} parent=1 // pred_fallthru
      _
    // Predicated region
    $region34: #{tpu_custom_call.1} parent=1 // pred_check
      _
    $region35: #{tpu_custom_call.1} parent=1 // pred_check_branch
      %74 = sbr.rel (0) target = $region37
    $region36: #{tpu_custom_call.1} parent=1 // pred_region
      %75 = dma.done [#allocation6], 1024
    $region37: #{tpu_custom_call.1} parent=1 // pred_fallthru
      _
    // Predicated region
    $region38: #{tpu_custom_call.1} parent=1 // pred_check
      _
    $region39: #{tpu_custom_call.1} parent=1 // pred_check_branch
      %77 = sbr.rel (0) target = $region41
    $region40: #{tpu_custom_call.1} parent=1 // pred_region
      %78 = dma.done [#allocation6], 1024
    $region41: #{tpu_custom_call.1} parent=1 // pred_fallthru
      _
    // Predicated region
    $region42: #{tpu_custom_call.1} parent=1 // pred_check
      _
    $region43: #{tpu_custom_call.1} parent=1 // pred_check_branch
      %80 = sbr.rel (0) target = $region45
    $region44: #{tpu_custom_call.1} parent=1 // pred_region
      %81 = dma.done [#allocation9], 1024
    $region45: #{tpu_custom_call.1} parent=1 // pred_fallthru
      _
    %v83 = vld [vmem:[#allocation2] sm:$0xf]
    %v84 = vld [vmem:[#allocation2 + $0x4] sm:$0xf]
    %v85 = vld [vmem:[#allocation2 + $0x8] sm:$0xf]
    %v86 = vld [vmem:[#allocation2 + $0xc] sm:$0xf]
    %v87 = vld [vmem:[#allocation2 + $0x10] sm:$0xf]
    %v88 = vld [vmem:[#allocation2 + $0x14] sm:$0xf]
    %v89 = vld [vmem:[#allocation2 + $0x18] sm:$0xf]
    %v90 = vld [vmem:[#allocation2 + $0x1c] sm:$0xf]
    %v91 = vld [vmem:[#allocation5] sm:$0xf]
    %v92 = vld [vmem:[#allocation5 + $0x4] sm:$0xf]
    %v93 = vld [vmem:[#allocation5 + $0x8] sm:$0xf]
    %v94 = vld [vmem:[#allocation5 + $0xc] sm:$0xf]
    %v95 = vld [vmem:[#allocation5 + $0x10] sm:$0xf]
    %v96 = vld [vmem:[#allocation5 + $0x14] sm:$0xf]
    %v97 = vld [vmem:[#allocation5 + $0x18] sm:$0xf]
    %v98 = vld [vmem:[#allocation5 + $0x1c] sm:$0xf]
    %v99 = vld [vmem:[#allocation5 + $0x20] sm:$0xf]
    %v100 = vld [vmem:[#allocation5 + $0x24] sm:$0xf]
    %v101 = vld [vmem:[#allocation5 + $0x28] sm:$0xf]
    %v102 = vld [vmem:[#allocation5 + $0x2c] sm:$0xf]
    %v103 = vld [vmem:[#allocation5 + $0x30] sm:$0xf]
    %v104 = vld [vmem:[#allocation5 + $0x34] sm:$0xf]
    %v105 = vld [vmem:[#allocation5 + $0x38] sm:$0xf]
    %v106 = vld [vmem:[#allocation5 + $0x3c] sm:$0xf]
    %v107 = vld [vmem:[%s2] sm:$0x1]
    %v109 = vlaneseq
    %v110 = vshrl.u32 %v109, 7
    %v111 = vsub.s32 0, %v110
    %v112 = vrot.slane %v107, %v111
    %v122 = vunpack.c.l.b16 %v83
    %v123 = vunpack.c.l.b16 %v84
    %v124 = vunpack.c.l.b16 %v85
    %v125 = vunpack.c.l.b16 %v86
    %v126 = vunpack.c.l.b16 %v87
    %v127 = vunpack.c.l.b16 %v88
    %v128 = vunpack.c.l.b16 %v89
    %v129 = vunpack.c.l.b16 %v90
    %v130 = vpack.c.b16 %v123, %v122
    %v131 = vpack.c.b16 %v125, %v124
    %v132 = vpack.c.b16 %v127, %v126
    %v133 = vpack.c.b16 %v129, %v128
    %v154 = vunpack.c.l.b16 %v91
    %v155 = vunpack.c.l.b16 %v92
    %v156 = vunpack.c.l.b16 %v93
    %v157 = vunpack.c.l.b16 %v94
    %v158 = vunpack.c.l.b16 %v95
    %v159 = vunpack.c.l.b16 %v96
    %v160 = vunpack.c.l.b16 %v97
    %v161 = vunpack.c.l.b16 %v98
    %v162 = vunpack.c.l.b16 %v99
    %v163 = vunpack.c.l.b16 %v100
    %v164 = vunpack.c.l.b16 %v101
    %v165 = vunpack.c.l.b16 %v102
    %v166 = vunpack.c.l.b16 %v103
    %v167 = vunpack.c.l.b16 %v104
    %v168 = vunpack.c.l.b16 %v105
    %v169 = vunpack.c.l.b16 %v106
    %v170 = vpack.c.b16 %v155, %v154
    %v171 = vpack.c.b16 %v157, %v156
    %v172 = vpack.c.b16 %v159, %v158
    %v173 = vpack.c.b16 %v161, %v160
    %v174 = vpack.c.b16 %v163, %v162
    %v175 = vpack.c.b16 %v165, %v164
    %v176 = vpack.c.b16 %v167, %v166
    %v177 = vpack.c.b16 %v169, %v168
    %186 = vmatprep.subr.bf16.mxu0 0
    %187 = vmatpush1.bf16.msra.mxu0 %v170
    %188 = vmatprep.subr.bf16.mxu0 0
    %189 = vmatpush1.bf16.msra.mxu0 %v171
    %190 = vmatprep.subr.bf16.mxu0 0
    %191 = vmatpush1.bf16.msra.mxu0 %v172
    %192 = vmatprep.subr.bf16.mxu0 0
    %193 = vmatpush1.bf16.msra.mxu0 %v173
    %194 = vmatprep.subr.bf16.mxu0 0
    %195 = vmatpush1.bf16.msra.mxu0 %v174
    %196 = vmatprep.subr.bf16.mxu0 0
    %197 = vmatpush1.bf16.msra.mxu0 %v175
    %198 = vmatprep.subr.bf16.mxu0 0
    %199 = vmatpush1.bf16.msra.mxu0 %v176
    %200 = vmatprep.subr.bf16.mxu0 0
    %201 = vmatpush1.bf16.msra.mxu0 %v177
    %202 = vmatprep.subr.bf16.mxu0 0
    %203 = vmatpush1.bf16.msra.mxu0 0
    %204 = vmatprep.subr.bf16.mxu0 0
    %205 = vmatpush1.bf16.msra.mxu0 0
    %206 = vmatprep.subr.bf16.mxu0 0
    %207 = vmatpush1.bf16.msra.mxu0 0
    %208 = vmatprep.subr.bf16.mxu0 0
    %209 = vmatpush1.bf16.msra.mxu0 0
    %210 = vmatprep.subr.bf16.mxu0 0
    %211 = vmatpush1.bf16.msra.mxu0 0
    %212 = vmatprep.subr.bf16.mxu0 0
    %213 = vmatpush1.bf16.msra.mxu0 0
    %214 = vmatprep.subr.bf16.mxu0 0
    %215 = vmatpush1.bf16.msra.mxu0 0
    %216 = vmatprep.subr.bf16.mxu0 0
    %217 = vmatpush1.bf16.msra.mxu0 0
    %218 = vmatprep.mubr.bf16.mxu0 0
    %219 = vmatmul.mubr.bf16.gmra.mrb[0].mxu0 %v130
    %v220 = vpop.f32.mrb[0].mxu0
    %v221 = vadd.f32 %v112, %v220
    %v222 = vpop.f32.mrb[0].mxu0
    %v223 = vpop.f32.mrb[0].mxu0
    %v224 = vadd.f32 %v112, %v223
    %v225 = vpop.f32.mrb[0].mxu0
    %226 = vmatprep.mubr.bf16.mxu0 0
    %227 = vmatmul.mubr.bf16.gmra.mrb[0].mxu0 %v131
    %v228 = vpop.f32.mrb[0].mxu0
    %v229 = vadd.f32 %v112, %v228
    %v230 = vpop.f32.mrb[0].mxu0
    %v231 = vpop.f32.mrb[0].mxu0
    %v232 = vadd.f32 %v112, %v231
    %v233 = vpop.f32.mrb[0].mxu0
    %234 = vmatprep.mubr.bf16.mxu0 0
    %235 = vmatmul.mubr.bf16.gmra.mrb[0].mxu0 %v132
    %v236 = vpop.f32.mrb[0].mxu0
    %v237 = vadd.f32 %v112, %v236
    %v238 = vpop.f32.mrb[0].mxu0
    %v239 = vpop.f32.mrb[0].mxu0
    %v240 = vadd.f32 %v112, %v239
    %v241 = vpop.f32.mrb[0].mxu0
    %242 = vmatprep.mubr.bf16.mxu0 0
    %243 = vmatmul.mubr.bf16.gmra.mrb[0].mxu0 %v133
    %v244 = vpop.f32.mrb[0].mxu0
    %v245 = vadd.f32 %v112, %v244
    %v246 = vpop.f32.mrb[0].mxu0
    %v247 = vpop.f32.mrb[0].mxu0
    %v248 = vadd.f32 %v112, %v247
    %v249 = vpop.f32.mrb[0].mxu0
    %250 = vdwg.mxu0
    %v251 = vmax.f32 %v221, 0.0
    %v252 = vmax.f32 %v224, 0.0
    %v253 = vmax.f32 %v229, 0.0
    %v254 = vmax.f32 %v232, 0.0
    %v255 = vmax.f32 %v237, 0.0
    %v256 = vmax.f32 %v240, 0.0
    %v257 = vmax.f32 %v245, 0.0
    %v258 = vmax.f32 %v248, 0.0
    %v259 = vpack.c.bf16 %v252, %v251
    %v260 = vpack.c.bf16 %v254, %v253
    %v261 = vpack.c.bf16 %v256, %v255
    %v262 = vpack.c.bf16 %v258, %v257
    %v263 = vld [vmem:[#allocation7] sm:$0xf]
    %v264 = vld [vmem:[#allocation7 + $0x4] sm:$0xf]
    %v265 = vld [vmem:[#allocation7 + $0x8] sm:$0xf]
    %v266 = vld [vmem:[#allocation7 + $0xc] sm:$0xf]
    %v267 = vld [vmem:[#allocation7 + $0x10] sm:$0xf]
    %v268 = vld [vmem:[#allocation7 + $0x14] sm:$0xf]
    %v269 = vld [vmem:[#allocation7 + $0x18] sm:$0xf]
    %v270 = vld [vmem:[#allocation7 + $0x1c] sm:$0xf]
    %v271 = vld [vmem:[#allocation7 + $0x20] sm:$0xf]
    %v272 = vld [vmem:[#allocation7 + $0x24] sm:$0xf]
    %v273 = vld [vmem:[#allocation7 + $0x28] sm:$0xf]
    %v274 = vld [vmem:[#allocation7 + $0x2c] sm:$0xf]
    %v275 = vld [vmem:[#allocation7 + $0x30] sm:$0xf]
    %v276 = vld [vmem:[#allocation7 + $0x34] sm:$0xf]
    %v277 = vld [vmem:[#allocation7 + $0x38] sm:$0xf]
    %v278 = vld [vmem:[#allocation7 + $0x3c] sm:$0xf]
    %v279 = vld [vmem:[%s4] sm:$0x1]
    %v281 = vlaneseq
    %v282 = vshrl.u32 %v281, 7
    %v283 = vsub.s32 0, %v282
    %v284 = vrot.slane %v279, %v283
    %v302 = vunpack.c.l.b16 %v263
    %v303 = vunpack.c.l.b16 %v264
    %v304 = vunpack.c.l.b16 %v265
    %v305 = vunpack.c.l.b16 %v266
    %v306 = vunpack.c.l.b16 %v267
    %v307 = vunpack.c.l.b16 %v268
    %v308 = vunpack.c.l.b16 %v269
    %v309 = vunpack.c.l.b16 %v270
    %v310 = vunpack.c.l.b16 %v271
    %v311 = vunpack.c.l.b16 %v272
    %v312 = vunpack.c.l.b16 %v273
    %v313 = vunpack.c.l.b16 %v274
    %v314 = vunpack.c.l.b16 %v275
    %v315 = vunpack.c.l.b16 %v276
    %v316 = vunpack.c.l.b16 %v277
    %v317 = vunpack.c.l.b16 %v278
    %v318 = vpack.c.b16 %v303, %v302
    %v319 = vpack.c.b16 %v305, %v304
    %v320 = vpack.c.b16 %v307, %v306
    %v321 = vpack.c.b16 %v309, %v308
    %v322 = vpack.c.b16 %v311, %v310
    %v323 = vpack.c.b16 %v313, %v312
    %v324 = vpack.c.b16 %v315, %v314
    %v325 = vpack.c.b16 %v317, %v316
    %334 = vmatprep.subr.bf16.mxu0 0
    %335 = vmatpush1.bf16.msra.mxu0 %v318
    %336 = vmatprep.subr.bf16.mxu0 0
    %337 = vmatpush1.bf16.msra.mxu0 %v319
    %338 = vmatprep.subr.bf16.mxu0 0
    %339 = vmatpush1.bf16.msra.mxu0 %v320
    %340 = vmatprep.subr.bf16.mxu0 0
    %341 = vmatpush1.bf16.msra.mxu0 %v321
    %342 = vmatprep.subr.bf16.mxu0 0
    %343 = vmatpush1.bf16.msra.mxu0 %v322
    %344 = vmatprep.subr.bf16.mxu0 0
    %345 = vmatpush1.bf16.msra.mxu0 %v323
    %346 = vmatprep.subr.bf16.mxu0 0
    %347 = vmatpush1.bf16.msra.mxu0 %v324
    %348 = vmatprep.subr.bf16.mxu0 0
    %349 = vmatpush1.bf16.msra.mxu0 %v325
    %350 = vmatprep.subr.bf16.mxu0 0
    %351 = vmatpush1.bf16.msra.mxu0 0
    %352 = vmatprep.subr.bf16.mxu0 0
    %353 = vmatpush1.bf16.msra.mxu0 0
    %354 = vmatprep.subr.bf16.mxu0 0
    %355 = vmatpush1.bf16.msra.mxu0 0
    %356 = vmatprep.subr.bf16.mxu0 0
    %357 = vmatpush1.bf16.msra.mxu0 0
    %358 = vmatprep.subr.bf16.mxu0 0
    %359 = vmatpush1.bf16.msra.mxu0 0
    %360 = vmatprep.subr.bf16.mxu0 0
    %361 = vmatpush1.bf16.msra.mxu0 0
    %362 = vmatprep.subr.bf16.mxu0 0
    %363 = vmatpush1.bf16.msra.mxu0 0
    %364 = vmatprep.subr.bf16.mxu0 0
    %365 = vmatpush1.bf16.msra.mxu0 0
    %366 = vmatprep.mubr.bf16.mxu0 0
    %367 = vmatmul.mubr.bf16.gmra.mrb[0].mxu0 %v259
    %v368 = vpop.f32.mrb[0].mxu0
    %v369 = vadd.f32 %v284, %v368
    %v370 = vpop.f32.mrb[0].mxu0
    %v371 = vpop.f32.mrb[0].mxu0
    %v372 = vadd.f32 %v284, %v371
    %v373 = vpop.f32.mrb[0].mxu0
    %374 = vmatprep.mubr.bf16.mxu0 0
    %375 = vmatmul.mubr.bf16.gmra.mrb[0].mxu0 %v260
    %v376 = vpop.f32.mrb[0].mxu0
    %v377 = vadd.f32 %v284, %v376
    %v378 = vpop.f32.mrb[0].mxu0
    %v379 = vpop.f32.mrb[0].mxu0
    %v380 = vadd.f32 %v284, %v379
    %v381 = vpop.f32.mrb[0].mxu0
    %382 = vmatprep.mubr.bf16.mxu0 0
    %383 = vmatmul.mubr.bf16.gmra.mrb[0].mxu0 %v261
    %v384 = vpop.f32.mrb[0].mxu0
    %v385 = vadd.f32 %v284, %v384
    %v386 = vpop.f32.mrb[0].mxu0
    %v387 = vpop.f32.mrb[0].mxu0
    %v388 = vadd.f32 %v284, %v387
    %v389 = vpop.f32.mrb[0].mxu0
    %390 = vmatprep.mubr.bf16.mxu0 0
    %391 = vmatmul.mubr.bf16.gmra.mrb[0].mxu0 %v262
    %v392 = vpop.f32.mrb[0].mxu0
    %v393 = vadd.f32 %v284, %v392
    %v394 = vpop.f32.mrb[0].mxu0
    %v395 = vpop.f32.mrb[0].mxu0
    %v396 = vadd.f32 %v284, %v395
    %v397 = vpop.f32.mrb[0].mxu0
    %398 = vdwg.mxu0
    %v399 = vmax.f32 %v369, 0.0
    %v400 = vmax.f32 %v372, 0.0
    %v401 = vmax.f32 %v377, 0.0
    %v402 = vmax.f32 %v380, 0.0
    %v403 = vmax.f32 %v385, 0.0
    %v404 = vmax.f32 %v388, 0.0
    %v405 = vmax.f32 %v393, 0.0
    %v406 = vmax.f32 %v396, 0.0
    %v407 = vpack.c.bf16 %v400, %v399
    %v408 = vpack.c.bf16 %v402, %v401
    %v409 = vpack.c.bf16 %v404, %v403
    %v410 = vpack.c.bf16 %v406, %v405
    %v411 = vld [vmem:[#allocation8] sm:$0xf]
    %v412 = vld [vmem:[#allocation8 + $0x4] sm:$0xf]
    %v413 = vld [vmem:[#allocation8 + $0x8] sm:$0xf]
    %v414 = vld [vmem:[#allocation8 + $0xc] sm:$0xf]
    %v415 = vld [vmem:[#allocation8 + $0x10] sm:$0xf]
    %v416 = vld [vmem:[#allocation8 + $0x14] sm:$0xf]
    %v417 = vld [vmem:[#allocation8 + $0x18] sm:$0xf]
    %v418 = vld [vmem:[#allocation8 + $0x1c] sm:$0xf]
    %v419 = vld [vmem:[#allocation8 + $0x20] sm:$0xf]
    %v420 = vld [vmem:[#allocation8 + $0x24] sm:$0xf]
    %v421 = vld [vmem:[#allocation8 + $0x28] sm:$0xf]
    %v422 = vld [vmem:[#allocation8 + $0x2c] sm:$0xf]
    %v423 = vld [vmem:[#allocation8 + $0x30] sm:$0xf]
    %v424 = vld [vmem:[#allocation8 + $0x34] sm:$0xf]
    %v425 = vld [vmem:[#allocation8 + $0x38] sm:$0xf]
    %v426 = vld [vmem:[#allocation8 + $0x3c] sm:$0xf]
    %v427 = vld [vmem:[%s6] sm:$0x1]
    %v429 = vlaneseq
    %v430 = vshrl.u32 %v429, 7
    %v431 = vsub.s32 0, %v430
    %v432 = vrot.slane %v427, %v431
    %v450 = vunpack.c.l.b16 %v411
    %v451 = vunpack.c.l.b16 %v412
    %v452 = vunpack.c.l.b16 %v413
    %v453 = vunpack.c.l.b16 %v414
    %v454 = vunpack.c.l.b16 %v415
    %v455 = vunpack.c.l.b16 %v416
    %v456 = vunpack.c.l.b16 %v417
    %v457 = vunpack.c.l.b16 %v418
    %v458 = vunpack.c.l.b16 %v419
    %v459 = vunpack.c.l.b16 %v420
    %v460 = vunpack.c.l.b16 %v421
    %v461 = vunpack.c.l.b16 %v422
    %v462 = vunpack.c.l.b16 %v423
    %v463 = vunpack.c.l.b16 %v424
    %v464 = vunpack.c.l.b16 %v425
    %v465 = vunpack.c.l.b16 %v426
    %v466 = vpack.c.b16 %v451, %v450
    %v467 = vpack.c.b16 %v453, %v452
    %v468 = vpack.c.b16 %v455, %v454
    %v469 = vpack.c.b16 %v457, %v456
    %v470 = vpack.c.b16 %v459, %v458
    %v471 = vpack.c.b16 %v461, %v460
    %v472 = vpack.c.b16 %v463, %v462
    %v473 = vpack.c.b16 %v465, %v464
    %482 = vmatprep.subr.bf16.mxu0 0
    %483 = vmatpush1.bf16.msra.mxu0 %v466
    %484 = vmatprep.subr.bf16.mxu0 0
    %485 = vmatpush1.bf16.msra.mxu0 %v467
    %486 = vmatprep.subr.bf16.mxu0 0
    %487 = vmatpush1.bf16.msra.mxu0 %v468
    %488 = vmatprep.subr.bf16.mxu0 0
    %489 = vmatpush1.bf16.msra.mxu0 %v469
    %490 = vmatprep.subr.bf16.mxu0 0
    %491 = vmatpush1.bf16.msra.mxu0 %v470
    %492 = vmatprep.subr.bf16.mxu0 0
    %493 = vmatpush1.bf16.msra.mxu0 %v471
    %494 = vmatprep.subr.bf16.mxu0 0
    %495 = vmatpush1.bf16.msra.mxu0 %v472
    %496 = vmatprep.subr.bf16.mxu0 0
    %497 = vmatpush1.bf16.msra.mxu0 %v473
    %498 = vmatprep.subr.bf16.mxu0 0
    %499 = vmatpush1.bf16.msra.mxu0 0
    %500 = vmatprep.subr.bf16.mxu0 0
    %501 = vmatpush1.bf16.msra.mxu0 0
    %502 = vmatprep.subr.bf16.mxu0 0
    %503 = vmatpush1.bf16.msra.mxu0 0
    %504 = vmatprep.subr.bf16.mxu0 0
    %505 = vmatpush1.bf16.msra.mxu0 0
    %506 = vmatprep.subr.bf16.mxu0 0
    %507 = vmatpush1.bf16.msra.mxu0 0
    %508 = vmatprep.subr.bf16.mxu0 0
    %509 = vmatpush1.bf16.msra.mxu0 0
    %510 = vmatprep.subr.bf16.mxu0 0
    %511 = vmatpush1.bf16.msra.mxu0 0
    %512 = vmatprep.subr.bf16.mxu0 0
    %513 = vmatpush1.bf16.msra.mxu0 0
    %514 = vmatprep.mubr.bf16.mxu0 0
    %515 = vmatmul.mubr.bf16.gmra.mrb[0].mxu0 %v407
    %v516 = vpop.f32.mrb[0].mxu0
    %v517 = vadd.f32 %v432, %v516
    %v518 = vpop.f32.mrb[0].mxu0
    %v519 = vpop.f32.mrb[0].mxu0
    %v520 = vadd.f32 %v432, %v519
    %v521 = vpop.f32.mrb[0].mxu0
    %522 = vmatprep.mubr.bf16.mxu0 0
    %523 = vmatmul.mubr.bf16.gmra.mrb[0].mxu0 %v408
    %v524 = vpop.f32.mrb[0].mxu0
    %v525 = vadd.f32 %v432, %v524
    %v526 = vpop.f32.mrb[0].mxu0
    %v527 = vpop.f32.mrb[0].mxu0
    %v528 = vadd.f32 %v432, %v527
    %v529 = vpop.f32.mrb[0].mxu0
    %530 = vmatprep.mubr.bf16.mxu0 0
    %531 = vmatmul.mubr.bf16.gmra.mrb[0].mxu0 %v409
    %v532 = vpop.f32.mrb[0].mxu0
    %v533 = vadd.f32 %v432, %v532
    %v534 = vpop.f32.mrb[0].mxu0
    %v535 = vpop.f32.mrb[0].mxu0
    %v536 = vadd.f32 %v432, %v535
    %v537 = vpop.f32.mrb[0].mxu0
    %538 = vmatprep.mubr.bf16.mxu0 0
    %539 = vmatmul.mubr.bf16.gmra.mrb[0].mxu0 %v410
    %v540 = vpop.f32.mrb[0].mxu0
    %v541 = vadd.f32 %v432, %v540
    %v542 = vpop.f32.mrb[0].mxu0
    %v543 = vpop.f32.mrb[0].mxu0
    %v544 = vadd.f32 %v432, %v543
    %v545 = vpop.f32.mrb[0].mxu0
    %546 = vdwg.mxu0
    %547 = vst [vmem:[#allocation10] sm:$0xff] %v517
    %548 = vst [vmem:[#allocation10 + $0x8] sm:$0xff] %v520
    %549 = vst [vmem:[#allocation10 + $0x10] sm:$0xff] %v525
    %550 = vst [vmem:[#allocation10 + $0x18] sm:$0xff] %v528
    %551 = vst [vmem:[#allocation10 + $0x20] sm:$0xff] %v533
    %552 = vst [vmem:[#allocation10 + $0x28] sm:$0xff] %v536
    %553 = vst [vmem:[#allocation10 + $0x30] sm:$0xff] %v541
    %554 = vst [vmem:[#allocation10 + $0x38] sm:$0xff] %v544
    // Predicated region
    $region46: #{tpu_custom_call.1} parent=1 // pred_check
      _
    $region47: #{tpu_custom_call.1} parent=1 // pred_check_branch
      %556 = sbr.rel (0) target = $region49
    $region48: #{tpu_custom_call.1} parent=1 // pred_region
      %s558 = ssub.s32 1024, 1024
      %559 = vsyncadd [#allocation4], %s558
      %s560 = sshll.u32 [#allocation10], 4
      %s561 = int_to_ptr.vmem [resolvable:$true] %s560
      %566 = dma.vmem_to_hbm [thread:$0]  %s561, 1024, %s7, [#allocation4], 128, 128, 8
    $region49: #{tpu_custom_call.1} parent=1 // pred_fallthru
      _
    // Predicated region
    $region50: #{tpu_custom_call.1} parent=1 // pred_check
      _
    $region51: #{tpu_custom_call.1} parent=1 // pred_check_branch
      %568 = sbr.rel (0) target = $region53
    $region52: #{tpu_custom_call.1} parent=1 // pred_region
      %569 = dma.done [#allocation4], 1024
    $region53: #{tpu_custom_call.1} parent=1 // pred_fallthru
      _
    %570 = vsyncpa [#allocation3], 1
    %571 = vsyncpa [#allocation6], 1
    %572 = vsyncpa [#allocation9], 1
    %573 = vsyncpa [#allocation4], 1

</llo_original>
